<compile_context>
chip_gen: v6e
topology: v6e:2x2x1
jax: 0.10.0
libtpu: 0.0.40
codegen_flags: <defaults>
</compile_context>

<pallas_src>
import jax
import jax.numpy as jnp
from jax import lax
from jax.experimental import pallas as pl
from jax.experimental.pallas import tpu as pltpu

EPS = 1e-5  # nn.LayerNorm default


def _rcv_layernorm_kernel(x_ref, w_ref, b_ref, o_ref):
    # x_ref: (tile_rows, F) — rows alternate real/imag (even = real, odd = imag)
    # w_ref/b_ref: (2, F)   o_ref: (tile_rows, F)
    tile_rows, feat = x_ref.shape
    x = x_ref[...].astype(jnp.float32)

    mean = jnp.mean(x, axis=-1, keepdims=True)
    xc = x - mean
    var = jnp.mean(xc * xc, axis=-1, keepdims=True)      # biased var (PyTorch LN)
    inv = lax.rsqrt(var + EPS)

    # Hoisted, once-per-tile parity select of affine params.
    # tile_rows is even, so local row parity == global row parity.
    par = lax.broadcasted_iota(jnp.int32, (tile_rows, feat), 0) & 1
    w = w_ref[...].astype(jnp.float32)
    b = b_ref[...].astype(jnp.float32)
    w_tile = jnp.where(par == 0, w[0:1, :], w[1:2, :])
    b_tile = jnp.where(par == 0, b[0:1, :], b[1:2, :])

    o_ref[...] = (xc * inv * w_tile + b_tile).astype(o_ref.dtype)


def _choose_tile_rows(total_rows, feat, itemsize, target_bytes=2 << 20):
    """Pick a row-tile that is a multiple of 8 (sublane) and ~target_bytes."""
    rows = max(1, target_bytes // max(feat * itemsize, 1))
    rows = min(rows, total_rows)
    rows = max(8, (rows // 8) * 8)
    return rows


def rcv_layernorm(x, weight, bias, *, tile_rows=None, vmem_limit_bytes=None):
    """x: [B, 2, F]; weight/bias: [2, F] (row 0 = real LN params, row 1 = imag)."""
    B, C, F = x.shape
    assert C == 2, "expected input layout [B, 2, F]"
    assert weight.shape == (2, F) and bias.shape == (2, F)

    R = 2 * B
    x2 = x.reshape(R, F)  # contiguous reshape: row 2b = real(b), row 2b+1 = imag(b)

    itemsize = jnp.dtype(x.dtype).itemsize
    if tile_rows is None:
        tile_rows = _choose_tile_rows(R, F, itemsize)
    assert tile_rows % 8 == 0  # sublane-aligned, hence even (parity trick holds)

    num_tiles = pl.cdiv(R, tile_rows)
    r_pad = num_tiles * tile_rows
    if r_pad != R:
        # Padded rows are zeros: mean=0, var=0 -> finite garbage, sliced off below.
        x2 = jnp.pad(x2, ((0, r_pad - R), (0, 0)))

    if vmem_limit_bytes is None:
        tile_bytes = tile_rows * F * itemsize
        # x tile + out tile, double-buffered, + resident params + headroom.
        need = 4 * tile_bytes + 4 * 2 * F * 4 + (2 << 20)
        if need > (16 << 20):  # smallest default scoped VMEM (v5e)
            vmem_limit_bytes = min(2 * need, 64 << 20)

    out2 = pl.pallas_call(
        _rcv_layernorm_kernel,
        out_shape=jax.ShapeDtypeStruct((r_pad, F), x.dtype),
        grid_spec=pltpu.PrefetchScalarGridSpec(
            num_scalar_prefetch=0,
            grid=(num_tiles,),
            in_specs=[
                pl.BlockSpec((tile_rows, F), lambda i: (i, 0)),
                pl.BlockSpec((2, F), lambda i: (0, 0)),   # weight: resident
                pl.BlockSpec((2, F), lambda i: (0, 0)),   # bias:   resident
            ],
            out_specs=pl.BlockSpec((tile_rows, F), lambda i: (i, 0)),
        ),
        compiler_params=pltpu.CompilerParams(
            dimension_semantics=("parallel",),
            vmem_limit_bytes=vmem_limit_bytes,
        ),
    )(x2, weight, bias)

    if r_pad != R:
        out2 = out2[:R]
    return out2.reshape(B, 2, F)


def reference(x, weight, bias):
    xr = x[:, 0, :]
    xi = x[:, 1, :]

    def ln(v, w, b):
        m = jnp.mean(v, axis=-1, keepdims=True)
        c = v - m
        var = jnp.mean(c * c, axis=-1, keepdims=True)
        return c * lax.rsqrt(var + EPS) * w + b

    out_r = ln(xr, weight[0], bias[0])
    out_i = ln(xi, weight[1], bias[1])
    return jnp.stack((out_r, out_i), axis=-2)


if __name__ == "__main__":
    B, F = 16, 128  # small but lane-dense (F multiple of 128)
    key = jax.random.PRNGKey(0)
    kx, kw, kb = jax.random.split(key, 3)

    x = jax.random.normal(kx, (B, 2, F), dtype=jnp.float32)
    # nn.LayerNorm defaults are ones/zeros; perturb so the affine path is exercised.
    weight = jnp.ones((2, F), jnp.float32) + 0.1 * jax.random.normal(kw, (2, F), dtype=jnp.float32)
    bias = 0.1 * jax.random.normal(kb, (2, F), dtype=jnp.float32)

    out = rcv_layernorm(x, weight, bias)
    out = jax.block_until_ready(out)

    ref = reference(x, weight, bias)
    assert out.shape == (B, 2, F)
    max_err = float(jnp.max(jnp.abs(out - ref)))
    assert jnp.allclose(out, ref, atol=1e-5, rtol=1e-5), max_err
    print("KERNEL_OK")
</pallas_src>

<mosaic_0001>
module attributes {stable_mosaic.version = 11 : i64} {
  func.func @_rcv_layernorm_kernel(%arg0: i32, %arg1: memref<32x128xf32, #tpu.memory_space<vmem>>, %arg2: memref<2x128xf32, #tpu.memory_space<vmem>>, %arg3: memref<2x128xf32, #tpu.memory_space<vmem>>, %arg4: memref<32x128xf32, #tpu.memory_space<vmem>>) attributes {dimension_semantics = [#tpu.dimension_semantics<parallel>], iteration_bounds = array<i64: 1>, scalar_prefetch = 0 : i64, scratch_operands = 0 : i64, tpu.core_type = #tpu.core_type<tc>, window_params = [{transform_indices = @transform_0, window_bounds = array<i64: 32, 128>}, {pipeline_mode = #tpu.pipeline_mode<synchronous>, transform_indices = @transform_1, window_bounds = array<i64: 2, 128>}, {pipeline_mode = #tpu.pipeline_mode<synchronous>, transform_indices = @transform_2, window_bounds = array<i64: 2, 128>}, {transform_indices = @transform_3, window_bounds = array<i64: 32, 128>}]} {
    %c0 = arith.constant 0 : index
    %c0_0 = arith.constant 0 : index
    %0 = vector.load %arg1[%c0, %c0_0] : memref<32x128xf32, #tpu.memory_space<vmem>>, vector<32x128xf32>
    %cst = arith.constant dense<0.000000e+00> : vector<32xf32>
    %1 = vector.multi_reduction <add>, %0, %cst [1] : vector<32x128xf32> to vector<32xf32>
    %2 = vector.shape_cast %1 : vector<32xf32> to vector<32x1xf32>
    %cst_1 = arith.constant 1.280000e+02 : f32
    %3 = vector.broadcast %cst_1 : f32 to vector<32x1xf32>
    %4 = arith.divf %2, %3 : vector<32x1xf32>
    %5 = vector.broadcast %4 : vector<32x1xf32> to vector<32x128xf32>
    %6 = arith.subf %0, %5 : vector<32x128xf32>
    %7 = arith.mulf %6, %6 : vector<32x128xf32>
    %cst_2 = arith.constant dense<0.000000e+00> : vector<32xf32>
    %8 = vector.multi_reduction <add>, %7, %cst_2 [1] : vector<32x128xf32> to vector<32xf32>
    %9 = vector.shape_cast %8 : vector<32xf32> to vector<32x1xf32>
    %cst_3 = arith.constant 1.280000e+02 : f32
    %10 = vector.broadcast %cst_3 : f32 to vector<32x1xf32>
    %11 = arith.divf %9, %10 : vector<32x1xf32>
    %cst_4 = arith.constant 9.99999974E-6 : f32
    %12 = vector.broadcast %cst_4 : f32 to vector<32x1xf32>
    %13 = arith.addf %11, %12 : vector<32x1xf32>
    %14 = math.rsqrt %13 : vector<32x1xf32>
    %15 = tpu.iota {dimensions = array<i32: 0>} : vector<32x128xi32>
    %c1_i32 = arith.constant 1 : i32
    %16 = vector.broadcast %c1_i32 : i32 to vector<32x128xi32>
    %17 = arith.andi %15, %16 : vector<32x128xi32>
    %c0_5 = arith.constant 0 : index
    %c0_6 = arith.constant 0 : index
    %18 = vector.load %arg2[%c0_5, %c0_6] : memref<2x128xf32, #tpu.memory_space<vmem>>, vector<2x128xf32>
    %c0_7 = arith.constant 0 : index
    %c0_8 = arith.constant 0 : index
    %19 = vector.load %arg3[%c0_7, %c0_8] : memref<2x128xf32, #tpu.memory_space<vmem>>, vector<2x128xf32>
    %c0_i32 = arith.constant 0 : i32
    %20 = vector.broadcast %c0_i32 : i32 to vector<32x128xi32>
    %21 = arith.cmpi eq, %17, %20 : vector<32x128xi32>
    %22 = vector.extract_strided_slice %18 {offsets = [0, 0], sizes = [1, 128], strides = [1, 1]} : vector<2x128xf32> to vector<1x128xf32>
    %23 = vector.extract_strided_slice %18 {offsets = [1, 0], sizes = [1, 128], strides = [1, 1]} : vector<2x128xf32> to vector<1x128xf32>
    %24 = vector.shape_cast %22 : vector<1x128xf32> to vector<1x128xf32>
    %25 = vector.broadcast %24 : vector<1x128xf32> to vector<32x128xf32>
    %26 = vector.shape_cast %23 : vector<1x128xf32> to vector<1x128xf32>
    %27 = vector.broadcast %26 : vector<1x128xf32> to vector<32x128xf32>
    %28 = arith.select %21, %25, %27 : vector<32x128xi1>, vector<32x128xf32>
    %c0_i32_9 = arith.constant 0 : i32
    %29 = vector.broadcast %c0_i32_9 : i32 to vector<32x128xi32>
    %30 = arith.cmpi eq, %17, %29 : vector<32x128xi32>
    %31 = vector.extract_strided_slice %19 {offsets = [0, 0], sizes = [1, 128], strides = [1, 1]} : vector<2x128xf32> to vector<1x128xf32>
    %32 = vector.extract_strided_slice %19 {offsets = [1, 0], sizes = [1, 128], strides = [1, 1]} : vector<2x128xf32> to vector<1x128xf32>
    %33 = vector.shape_cast %31 : vector<1x128xf32> to vector<1x128xf32>
    %34 = vector.broadcast %33 : vector<1x128xf32> to vector<32x128xf32>
    %35 = vector.shape_cast %32 : vector<1x128xf32> to vector<1x128xf32>
    %36 = vector.broadcast %35 : vector<1x128xf32> to vector<32x128xf32>
    %37 = arith.select %30, %34, %36 : vector<32x128xi1>, vector<32x128xf32>
    %38 = vector.broadcast %14 : vector<32x1xf32> to vector<32x128xf32>
    %39 = arith.mulf %6, %38 : vector<32x128xf32>
    %40 = arith.mulf %39, %28 : vector<32x128xf32>
    %41 = arith.addf %40, %37 : vector<32x128xf32>
    %c0_10 = arith.constant 0 : index
    %c0_11 = arith.constant 0 : index
    %42 = vector.load %arg4[%c0_10, %c0_11] : memref<32x128xf32, #tpu.memory_space<vmem>>, vector<32x128xf32>
    tpu.vector_store %arg4[%c0_10, %c0_11], %41 {strides = array<i32>} : memref<32x128xf32, #tpu.memory_space<vmem>>, vector<32x128xf32>,
    return
  }
  func.func @transform_0(%arg0: i32) -> (i32, i32) {
    %c0_i32 = arith.constant 0 : i32
    %c0_i32_0 = arith.constant 0 : i32
    return %arg0, %c0_i32 : i32, i32
  }
  func.func @transform_1(%arg0: i32) -> (i32, i32) {
    %c0_i32 = arith.constant 0 : i32
    %c0_i32_0 = arith.constant 0 : i32
    %c0_i32_1 = arith.constant 0 : i32
    return %c0_i32, %c0_i32_0 : i32, i32
  }
  func.func @transform_2(%arg0: i32) -> (i32, i32) {
    %c0_i32 = arith.constant 0 : i32
    %c0_i32_0 = arith.constant 0 : i32
    %c0_i32_1 = arith.constant 0 : i32
    return %c0_i32, %c0_i32_0 : i32, i32
  }
  func.func @transform_3(%arg0: i32) -> (i32, i32) {
    %c0_i32 = arith.constant 0 : i32
    %c0_i32_0 = arith.constant 0 : i32
    return %arg0, %c0_i32 : i32, i32
  }
}

</mosaic_0001>

<llo_original>
// kernel: tpu_custom_call.1
$region0: #{tpu_custom_call.1}
  #allocation0 [shape = 'u32[]', space=smem, size = 0x4, offset = 0x4, fixed_abs, tag = 'smem constant byte address 0x4 - core index']
  #allocation1 [shape = 'u32[144,128]{1,0:T(1,128)}', space=vmem, size = 0x12000, scoped, tag = 'internal scratch']
  %s0 = inlined_call_operand.hbm [shape: f32[32,128], index: 0, kind: input, shape index: {}]
  %s1 = inlined_call_operand.hbm [shape: f32[2,128], index: 1, kind: input, shape index: {}]
  %s2 = inlined_call_operand.vmem [shape: f32[2,128], index: 2, kind: input, shape index: {}]
  %s3 = inlined_call_operand.hbm [shape: f32[32,128], index: 3, kind: output, shape index: {}]
  %s4 = sld [smem:[#allocation0]]
  $region30: #{tpu_custom_call.1} parent=0
    _
  %s6 = ssub.s32 1, %s4
  %s7 = scalar_select 0, %s6, %s4
  $region1: #{tpu_custom_call.1} parent=0
    #allocation2 [shape = 'u8[16384]{0}', space=vmem, size = 0x4000, scoped, tag = 'input window, operand 0, single buffered']
    #allocation3 [shape = 's32[1]{0}', space=sflag, size = 0x4, scoped, tag = 'scoped memory for tpu_custom_call.1']
    #allocation4 [shape = 's32[1]{0}', space=sflag, size = 0x4, scoped, tag = 'scoped memory for tpu_custom_call.1']
    #allocation5 [shape = 'u8[1024]{0}', space=vmem, size = 0x400, scoped, tag = 'input window, operand 1, single buffered']
    #allocation6 [shape = 's32[1]{0}', space=sflag, size = 0x4, scoped, tag = 'scoped memory for tpu_custom_call.1']
    #allocation7 [shape = 'u8[16384]{0}', space=vmem, size = 0x4000, scoped, tag = 'output window, operand 0, single buffered']
    %8 = vsyncpa [#allocation3], 0
    %9 = vsyncpa [#allocation6], 0
    %10 = vsyncpa [#allocation4], 0
    // Predicated region
    $region2: #{tpu_custom_call.1} parent=1 // pred_check
      _
    $region3: #{tpu_custom_call.1} parent=1 // pred_check_branch
      %12 = sbr.rel (0) target = $region5
    $region4: #{tpu_custom_call.1} parent=1 // pred_region
      %s14 = ssub.s32 512, 512
      %15 = vsyncadd [#allocation3], %s14
      %s16 = sshll.u32 [#allocation2], 4
      %s17 = int_to_ptr.vmem [resolvable:$true] %s16
      %22 = dma.hbm_to_vmem [thread:$0]  %s0, 512, %s17, [#allocation3], 128, 128, 8
    $region5: #{tpu_custom_call.1} parent=1 // pred_fallthru
      _
    // Predicated region
    $region6: #{tpu_custom_call.1} parent=1 // pred_check
      _
    $region7: #{tpu_custom_call.1} parent=1 // pred_check_branch
      %24 = sbr.rel (0) target = $region9
    $region8: #{tpu_custom_call.1} parent=1 // pred_region
      %s26 = ssub.s32 32, 32
      %27 = vsyncadd [#allocation6], %s26
      %s29 = sshll.u32 [#allocation5], 4
      %s30 = int_to_ptr.vmem [resolvable:$true] %s29
      %32 = dma.hbm_to_vmem [thread:$0]  %s1, 32, %s30, [#allocation6]
    $region9: #{tpu_custom_call.1} parent=1 // pred_fallthru
      _
    // Predicated region
    $region10: #{tpu_custom_call.1} parent=1 // pred_check
      _
    $region11: #{tpu_custom_call.1} parent=1 // pred_check_branch
      %34 = sbr.rel (0) target = $region13
    $region12: #{tpu_custom_call.1} parent=1 // pred_region
      _
    $region13: #{tpu_custom_call.1} parent=1 // pred_fallthru
      _
    // Predicated region
    $region14: #{tpu_custom_call.1} parent=1 // pred_check
      _
    $region15: #{tpu_custom_call.1} parent=1 // pred_check_branch
      %36 = sbr.rel (0) target = $region17
    $region16: #{tpu_custom_call.1} parent=1 // pred_region
      %37 = dma.done [#allocation3], 512
    $region17: #{tpu_custom_call.1} parent=1 // pred_fallthru
      _
    // Predicated region
    $region18: #{tpu_custom_call.1} parent=1 // pred_check
      _
    $region19: #{tpu_custom_call.1} parent=1 // pred_check_branch
      %39 = sbr.rel (0) target = $region21
    $region20: #{tpu_custom_call.1} parent=1 // pred_region
      %40 = dma.done [#allocation6], 32
    $region21: #{tpu_custom_call.1} parent=1 // pred_fallthru
      _
    %v41 = vld [vmem:[#allocation2] sm:$0xff]
    %v42 = vld [vmem:[#allocation2 + $0x8] sm:$0xff]
    %v43 = vld [vmem:[#allocation2 + $0x10] sm:$0xff]
    %v44 = vld [vmem:[#allocation2 + $0x18] sm:$0xff]
    %45 = vadd.xlane.f32.xlu0 %v41
    %v46 = vpop.xlane.xlu0 %45
    %47 = vadd.xlane.f32.xlu0 %v42
    %v48 = vpop.xlane.xlu0 %47
    %49 = vadd.xlane.f32.xlu0 %v43
    %v50 = vpop.xlane.xlu0 %49
    %51 = vadd.xlane.f32.xlu0 %v44
    %v52 = vpop.xlane.xlu0 %51
    %v53 = vrcp.pop 128.0
    %v54 = vmul.f32 %v46, %v53
    %v55 = vmul.f32 %v48, %v53
    %v56 = vmul.f32 %v50, %v53
    %v57 = vmul.f32 %v52, %v53
    %v58 = vsub.f32 %v41, %v54
    %v59 = vsub.f32 %v42, %v55
    %v60 = vsub.f32 %v43, %v56
    %v61 = vsub.f32 %v44, %v57
    %v62 = vmul.f32 %v58, %v58
    %v63 = vmul.f32 %v59, %v59
    %v64 = vmul.f32 %v60, %v60
    %v65 = vmul.f32 %v61, %v61
    %66 = vadd.xlane.f32.xlu0 %v62
    %v67 = vpop.xlane.xlu0 %66
    %68 = vadd.xlane.f32.xlu0 %v63
    %v69 = vpop.xlane.xlu0 %68
    %70 = vadd.xlane.f32.xlu0 %v64
    %v71 = vpop.xlane.xlu0 %70
    %72 = vadd.xlane.f32.xlu0 %v65
    %v73 = vpop.xlane.xlu0 %72
    %v74 = vmul.f32 %v67, %v53
    %v75 = vmul.f32 %v69, %v53
    %v76 = vmul.f32 %v71, %v53
    %v77 = vmul.f32 %v73, %v53
    %v78 = vadd.f32 %v74, 1e-05
    %v79 = vadd.f32 %v75, 1e-05
    %v80 = vadd.f32 %v76, 1e-05
    %v81 = vadd.f32 %v77, 1e-05
    %v82 = vrsqrt.pop %v78
    %v83 = vrsqrt.pop %v79
    %v84 = vrsqrt.pop %v80
    %v85 = vrsqrt.pop %v81
    %v86 = vlaneseq
    %v87 = vshrl.u32 %v86, 7
    %v88 = vadd.s32 %v87, 8
    %v89 = vadd.s32 %v87, 16
    %v90 = vadd.s32 %v87, 24
    %v91 = vand.u32 %v87, 1
    %v92 = vand.u32 %v88, 1
    %v93 = vand.u32 %v89, 1
    %v94 = vand.u32 %v90, 1
    %v95 = vld [vmem:[#allocation5] sm:$0x3]
    %v96 = vld [vmem:[%s2] sm:$0x3]
    %vm97 = vcmp.eq.s32.totalorder %v91, 0
    %vm98 = vcmp.eq.s32.totalorder %v92, 0
    %vm99 = vcmp.eq.s32.totalorder %v93, 0
    %vm100 = vcmp.eq.s32.totalorder %v94, 0
    %v101 = vlaneseq
    %v102 = vshrl.u32 %v101, 7
    %v103 = vsub.s32 0, %v102
    %v104 = vrot.slane %v95, %v103
    %v105 = vlaneseq
    %v106 = vshrl.u32 %v105, 7
    %v107 = vsub.s32 1, %v106
    %v108 = vrot.slane %v95, %v107
    %v109 = vsel %vm97, %v104, %v108
    %v110 = vsel %vm98, %v104, %v108
    %v111 = vsel %vm99, %v104, %v108
    %v112 = vsel %vm100, %v104, %v108
    %v113 = vlaneseq
    %v114 = vshrl.u32 %v113, 7
    %v115 = vsub.s32 0, %v114
    %v116 = vrot.slane %v96, %v115
    %v117 = vlaneseq
    %v118 = vshrl.u32 %v117, 7
    %v119 = vsub.s32 1, %v118
    %v120 = vrot.slane %v96, %v119
    %v121 = vsel %vm97, %v116, %v120
    %v122 = vsel %vm98, %v116, %v120
    %v123 = vsel %vm99, %v116, %v120
    %v124 = vsel %vm100, %v116, %v120
    %v125 = vmul.f32 %v58, %v82
    %v126 = vmul.f32 %v59, %v83
    %v127 = vmul.f32 %v60, %v84
    %v128 = vmul.f32 %v61, %v85
    %v129 = vmul.f32 %v125, %v109
    %v130 = vmul.f32 %v126, %v110
    %v131 = vmul.f32 %v127, %v111
    %v132 = vmul.f32 %v128, %v112
    %v133 = vadd.f32 %v129, %v121
    %v134 = vadd.f32 %v130, %v122
    %v135 = vadd.f32 %v131, %v123
    %v136 = vadd.f32 %v132, %v124
    %137 = vst [vmem:[#allocation7] sm:$0xff] %v133
    %138 = vst [vmem:[#allocation7 + $0x8] sm:$0xff] %v134
    %139 = vst [vmem:[#allocation7 + $0x10] sm:$0xff] %v135
    %140 = vst [vmem:[#allocation7 + $0x18] sm:$0xff] %v136
    // Predicated region
    $region22: #{tpu_custom_call.1} parent=1 // pred_check
      _
    $region23: #{tpu_custom_call.1} parent=1 // pred_check_branch
      %142 = sbr.rel (0) target = $region25
    $region24: #{tpu_custom_call.1} parent=1 // pred_region
      %s144 = ssub.s32 512, 512
      %145 = vsyncadd [#allocation4], %s144
      %s146 = sshll.u32 [#allocation7], 4
      %s147 = int_to_ptr.vmem [resolvable:$true] %s146
      %152 = dma.vmem_to_hbm [thread:$0]  %s147, 512, %s3, [#allocation4], 128, 128, 8
    $region25: #{tpu_custom_call.1} parent=1 // pred_fallthru
      _
    // Predicated region
    $region26: #{tpu_custom_call.1} parent=1 // pred_check
      _
    $region27: #{tpu_custom_call.1} parent=1 // pred_check_branch
      %154 = sbr.rel (0) target = $region29
    $region28: #{tpu_custom_call.1} parent=1 // pred_region
      %155 = dma.done [#allocation4], 512
    $region29: #{tpu_custom_call.1} parent=1 // pred_fallthru
      _
    %156 = vsyncpa [#allocation3], 1
    %157 = vsyncpa [#allocation6], 1
    %158 = vsyncpa [#allocation4], 1

</llo_original>
